<compile_context>
chip_gen: v5e
topology: v5e:2x2
jax: 0.10.0
libtpu: 0.0.40
codegen_flags: <defaults>
</compile_context>

<pallas_src>
import jax
import jax.numpy as jnp
from jax.experimental import pallas as pl
from jax.experimental.pallas import tpu as pltpu


# ----------------------------------------------------------------------------
# Fused kernel: encoder(s1) + encoder(s2) + feature combination + 3-layer MLP.
# ----------------------------------------------------------------------------
def fused_classifier_kernel(s12_ref, w_enc_ref, b_enc_ref,
                            w1_ref, b1_ref, w2_ref, b2_ref, w3_ref, b3_ref,
                            out_ref):
    _, tb, T, Dw = s12_ref.shape
    H2 = w_enc_ref.shape[1]

    # ---- encoder (stand-in) -------------------------------------------------
    # TODO(synk): the real encoder is eval(config['encoder_type'])(config) (a
    # BiLSTM max-pool encoder defined outside this file); the stand-in keeps the
    # exact (B, 2*enc_lstm_dim) output contract via a shared linear projection
    # per timestep + max-pool over time.
    s2d = s12_ref[...].reshape(2 * tb * T, Dw)            # one big MXU M dim
    h = jnp.dot(s2d, w_enc_ref[...],
                preferred_element_type=jnp.float32)        # (2*tb*T, 2H) f32
    h = h.reshape(2 * tb, T, H2)
    pooled = jnp.max(h, axis=1)                            # (2*tb, 2H)
    b_enc = b_enc_ref[...]                                 # bias after max-pool
    u = pooled[:tb] + b_enc                                # (tb, 2H)
    v = pooled[tb:] + b_enc                                # (tb, 2H)

    # ---- feature combination: single (tb, 4*2H) tile -> one K=4*2H matmul ----
    feats = jnp.concatenate([u, v, jnp.abs(u - v), u * v], axis=1)

    # ---- classifier MLP (Dropout layers -> identity at inference) -----------
    h1 = jnp.dot(feats.astype(w1_ref.dtype), w1_ref[...],
                 preferred_element_type=jnp.float32) + b1_ref[...]
    h1 = jnp.tanh(h1)                                      # f32 tanh (EUP)
    h2 = jnp.dot(h1.astype(w2_ref.dtype), w2_ref[...],
                 preferred_element_type=jnp.float32) + b2_ref[...]
    h2 = jnp.tanh(h2)
    out = jnp.dot(h2.astype(w3_ref.dtype), w3_ref[...],
                  preferred_element_type=jnp.float32) + b3_ref[...]
    out_ref[...] = out.astype(out_ref.dtype)


def classifier_net_forward(s1, s2, enc_params, cls_params, *,
                           compute_dtype=jnp.float32, batch_tile=None):
    """Fused forward pass. compute_dtype=bf16 halves DMA bytes / doubles MXU
    rate on v6e/v7x; f32 keeps bit parity with the reference."""
    w_enc, b_enc = enc_params
    w1, b1, w2, b2, w3, b3 = cls_params

    B, T, Dw = s1.shape
    H2 = w_enc.shape[1]
    inputdim, fc_dim = w1.shape
    n_classes = w3.shape[1]

    # Cast matmul operands at the pallas_call boundary; biases stay f32.
    s12 = jnp.stack([s1, s2], axis=0).astype(compute_dtype)      # (2, B, T, Dw)
    w_enc = w_enc.astype(compute_dtype)
    w1c, w2c, w3c = (w.astype(compute_dtype) for w in (w1, w2, w3))
    b_enc, b1, b2, b3 = (b.astype(jnp.float32) for b in (b_enc, b1, b2, b3))

    # Batch tile: full batch for small B; multiples of 8 (sublane) when tiling.
    if batch_tile is None:
        batch_tile = B if B <= 128 else (128 if B % 128 == 0 else B)
    tb = batch_tile
    assert B % tb == 0, "batch_tile must divide batch"
    grid = (B // tb,)

    whole = lambda i: (0, 0)
    # TODO(synk): at real InferSent dims (inputdim=16384, fc_dim=512), w1 must be
    # K-tiled with an 'arbitrary' reduction axis + f32 VMEM accumulator instead
    # of the whole-array BlockSpec used here (VMEM limits on v5e/v6e/v7x).
    return pl.pallas_call(
        fused_classifier_kernel,
        out_shape=jax.ShapeDtypeStruct((B, n_classes), jnp.float32),
        grid=grid,
        in_specs=[
            pl.BlockSpec((2, tb, T, Dw), lambda i: (0, i, 0, 0)),
            pl.BlockSpec((Dw, H2), whole),
            pl.BlockSpec((1, H2), whole),
            pl.BlockSpec((inputdim, fc_dim), whole),
            pl.BlockSpec((1, fc_dim), whole),
            pl.BlockSpec((fc_dim, fc_dim), whole),
            pl.BlockSpec((1, fc_dim), whole),
            pl.BlockSpec((fc_dim, n_classes), whole),
            pl.BlockSpec((1, n_classes), whole),
        ],
        out_specs=pl.BlockSpec((tb, n_classes), lambda i: (i, 0)),
        compiler_params=pltpu.CompilerParams(
            dimension_semantics=("parallel",)),
    )(s12, w_enc, b_enc, w1c, b1, w2c, b2, w3c, b3)


if __name__ == "__main__":
    # Small, forward-consistent config.
    config = dict(
        nonlinear_fc=True,
        fc_dim=64,
        n_classes=3,
        enc_lstm_dim=16,
        dpout_fc=0.0,
        word_emb_dim=32,
    )
    B, T = 4, 8
    H2 = 2 * config["enc_lstm_dim"]              # encoder output dim = 32
    inputdim = 4 * H2                            # 128
    fc_dim = config["fc_dim"]
    n_classes = config["n_classes"]
    Dw = config["word_emb_dim"]

    key = jax.random.PRNGKey(0)
    ks = jax.random.split(key, 10)

    # Deterministic synthetic parameters.
    w_enc = 0.1 * jax.random.normal(ks[0], (Dw, H2), jnp.float32)
    b_enc = 0.1 * jax.random.normal(ks[1], (1, H2), jnp.float32)

    w1 = 0.1 * jax.random.normal(ks[2], (inputdim, fc_dim), jnp.float32)
    b1 = 0.1 * jax.random.normal(ks[3], (1, fc_dim), jnp.float32)
    w2 = 0.1 * jax.random.normal(ks[4], (fc_dim, fc_dim), jnp.float32)
    b2 = 0.1 * jax.random.normal(ks[5], (1, fc_dim), jnp.float32)
    w3 = 0.1 * jax.random.normal(ks[6], (fc_dim, n_classes), jnp.float32)
    b3 = 0.1 * jax.random.normal(ks[7], (1, n_classes), jnp.float32)

    # Deterministic example inputs (word-embedding sequences for each sentence).
    s1 = jax.random.normal(ks[8], (B, T, Dw), jnp.float32)
    s2 = jax.random.normal(ks[9], (B, T, Dw), jnp.float32)

    enc_params = (w_enc, b_enc)
    cls_params = (w1, b1, w2, b2, w3, b3)

    # f32 path (bit-parity check against pure-JAX reference).
    out_f32 = jax.block_until_ready(
        classifier_net_forward(s1, s2, enc_params, cls_params,
                               compute_dtype=jnp.float32))

    # Pure-JAX reference of the Pallas path.
    def ref_encoder(s):
        return jnp.max(jnp.einsum("btd,dk->btk", s, w_enc), axis=1) + b_enc

    u_ref = ref_encoder(s1)
    v_ref = ref_encoder(s2)
    feats = jnp.concatenate(
        [u_ref, v_ref, jnp.abs(u_ref - v_ref), u_ref * v_ref], axis=1)
    h = jnp.tanh(feats @ w1 + b1)
    h = jnp.tanh(h @ w2 + b2)
    ref = h @ w3 + b3

    assert out_f32.shape == (B, n_classes)
    assert jnp.allclose(out_f32, ref, atol=1e-4, rtol=1e-4)

    # bf16 matmul-operand path (v6e/v7x fast path) — looser tolerance.
    out_bf16 = jax.block_until_ready(
        classifier_net_forward(s1, s2, enc_params, cls_params,
                               compute_dtype=jnp.bfloat16))
    assert out_bf16.shape == (B, n_classes)
    assert jnp.allclose(out_bf16, ref, atol=1e-1, rtol=1e-1)

    print("KERNEL_OK")
</pallas_src>

<mosaic_0001>
module attributes {stable_mosaic.version = 11 : i64} {
  func.func @fused_classifier_kernel(%arg0: i32, %arg1: memref<2x4x8x32xf32, #tpu.memory_space<vmem>>, %arg2: memref<32x32xf32, #tpu.memory_space<vmem>>, %arg3: memref<1x32xf32, #tpu.memory_space<vmem>>, %arg4: memref<128x64xf32, #tpu.memory_space<vmem>>, %arg5: memref<1x64xf32, #tpu.memory_space<vmem>>, %arg6: memref<64x64xf32, #tpu.memory_space<vmem>>, %arg7: memref<1x64xf32, #tpu.memory_space<vmem>>, %arg8: memref<64x3xf32, #tpu.memory_space<vmem>>, %arg9: memref<1x3xf32, #tpu.memory_space<vmem>>, %arg10: memref<4x3xf32, #tpu.memory_space<vmem>>) attributes {dimension_semantics = [#tpu.dimension_semantics<parallel>], iteration_bounds = array<i64: 1>, scalar_prefetch = 0 : i64, scratch_operands = 0 : i64, tpu.core_type = #tpu.core_type<tc>, window_params = [{transform_indices = @transform_0, window_bounds = array<i64: 2, 4, 8, 32>}, {pipeline_mode = #tpu.pipeline_mode<synchronous>, transform_indices = @transform_1, window_bounds = array<i64: 32, 32>}, {pipeline_mode = #tpu.pipeline_mode<synchronous>, transform_indices = @transform_2, window_bounds = array<i64: 1, 32>}, {pipeline_mode = #tpu.pipeline_mode<synchronous>, transform_indices = @transform_3, window_bounds = array<i64: 128, 64>}, {pipeline_mode = #tpu.pipeline_mode<synchronous>, transform_indices = @transform_4, window_bounds = array<i64: 1, 64>}, {pipeline_mode = #tpu.pipeline_mode<synchronous>, transform_indices = @transform_5, window_bounds = array<i64: 64, 64>}, {pipeline_mode = #tpu.pipeline_mode<synchronous>, transform_indices = @transform_6, window_bounds = array<i64: 1, 64>}, {pipeline_mode = #tpu.pipeline_mode<synchronous>, transform_indices = @transform_7, window_bounds = array<i64: 64, 3>}, {pipeline_mode = #tpu.pipeline_mode<synchronous>, transform_indices = @transform_8, window_bounds = array<i64: 1, 3>}, {transform_indices = @transform_9, window_bounds = array<i64: 4, 3>}]} {
    %c0 = arith.constant 0 : index
    %c0_0 = arith.constant 0 : index
    %c0_1 = arith.constant 0 : index
    %c0_2 = arith.constant 0 : index
    %0 = vector.load %arg1[%c0, %c0_0, %c0_1, %c0_2] : memref<2x4x8x32xf32, #tpu.memory_space<vmem>>, vector<2x4x8x32xf32>
    %1 = vector.shape_cast %0 : vector<2x4x8x32xf32> to vector<64x32xf32>
    %c0_3 = arith.constant 0 : index
    %c0_4 = arith.constant 0 : index
    %2 = vector.load %arg2[%c0_3, %c0_4] : memref<32x32xf32, #tpu.memory_space<vmem>>, vector<32x32xf32>
    %cst = arith.constant dense<0.000000e+00> : vector<64x32xf32>
    %3 = tpu.matmul %1, %2, %cst {dimension_numbers = #tpu.dot_dimension_numbers<[1], [0], [0], [1], [0, 0, 1, 1], [], []>} : vector<64x32xf32>, vector<32x32xf32>, vector<64x32xf32> -> vector<64x32xf32>
    %4 = vector.shape_cast %3 : vector<64x32xf32> to vector<8x8x32xf32>
    %cst_5 = arith.constant dense<0xFF800000> : vector<8x32xf32>
    %5 = vector.multi_reduction <maximumf>, %4, %cst_5 [1] : vector<8x8x32xf32> to vector<8x32xf32>
    %c0_6 = arith.constant 0 : index
    %c0_7 = arith.constant 0 : index
    %6 = vector.load %arg3[%c0_6, %c0_7] : memref<1x32xf32, #tpu.memory_space<vmem>>, vector<1x32xf32>
    %7 = vector.extract_strided_slice %5 {offsets = [0, 0], sizes = [4, 32], strides = [1, 1]} : vector<8x32xf32> to vector<4x32xf32>
    %8 = vector.broadcast %6 : vector<1x32xf32> to vector<4x32xf32>
    %9 = arith.addf %7, %8 : vector<4x32xf32>
    %10 = vector.extract_strided_slice %5 {offsets = [4, 0], sizes = [4, 32], strides = [1, 1]} : vector<8x32xf32> to vector<4x32xf32>
    %11 = vector.broadcast %6 : vector<1x32xf32> to vector<4x32xf32>
    %12 = arith.addf %10, %11 : vector<4x32xf32>
    %13 = arith.subf %9, %12 : vector<4x32xf32>
    %14 = math.absf %13 : vector<4x32xf32>
    %15 = arith.mulf %9, %12 : vector<4x32xf32>
    %16 = tpu.concatenate %9, %12, %14, %15 in 1 : vector<4x32xf32>, vector<4x32xf32>, vector<4x32xf32>, vector<4x32xf32> -> vector<4x128xf32>
    %c0_8 = arith.constant 0 : index
    %c0_9 = arith.constant 0 : index
    %17 = vector.load %arg4[%c0_8, %c0_9] : memref<128x64xf32, #tpu.memory_space<vmem>>, vector<128x64xf32>
    %cst_10 = arith.constant dense<0.000000e+00> : vector<4x64xf32>
    %18 = tpu.matmul %16, %17, %cst_10 {dimension_numbers = #tpu.dot_dimension_numbers<[1], [0], [0], [1], [0, 0, 1, 1], [], []>} : vector<4x128xf32>, vector<128x64xf32>, vector<4x64xf32> -> vector<4x64xf32>
    %c0_11 = arith.constant 0 : index
    %c0_12 = arith.constant 0 : index
    %19 = vector.load %arg5[%c0_11, %c0_12] : memref<1x64xf32, #tpu.memory_space<vmem>>, vector<1x64xf32>
    %20 = vector.broadcast %19 : vector<1x64xf32> to vector<4x64xf32>
    %21 = arith.addf %18, %20 : vector<4x64xf32>
    %22 = math.tanh %21 : vector<4x64xf32>
    %c0_13 = arith.constant 0 : index
    %c0_14 = arith.constant 0 : index
    %23 = vector.load %arg6[%c0_13, %c0_14] : memref<64x64xf32, #tpu.memory_space<vmem>>, vector<64x64xf32>
    %cst_15 = arith.constant dense<0.000000e+00> : vector<4x64xf32>
    %24 = tpu.matmul %22, %23, %cst_15 {dimension_numbers = #tpu.dot_dimension_numbers<[1], [0], [0], [1], [0, 0, 1, 1], [], []>} : vector<4x64xf32>, vector<64x64xf32>, vector<4x64xf32> -> vector<4x64xf32>
    %c0_16 = arith.constant 0 : index
    %c0_17 = arith.constant 0 : index
    %25 = vector.load %arg7[%c0_16, %c0_17] : memref<1x64xf32, #tpu.memory_space<vmem>>, vector<1x64xf32>
    %26 = vector.broadcast %25 : vector<1x64xf32> to vector<4x64xf32>
    %27 = arith.addf %24, %26 : vector<4x64xf32>
    %28 = math.tanh %27 : vector<4x64xf32>
    %c0_18 = arith.constant 0 : index
    %c0_19 = arith.constant 0 : index
    %29 = vector.load %arg8[%c0_18, %c0_19] : memref<64x3xf32, #tpu.memory_space<vmem>>, vector<64x3xf32>
    %cst_20 = arith.constant dense<0.000000e+00> : vector<4x3xf32>
    %30 = tpu.matmul %28, %29, %cst_20 {dimension_numbers = #tpu.dot_dimension_numbers<[1], [0], [0], [1], [0, 0, 1, 1], [], []>} : vector<4x64xf32>, vector<64x3xf32>, vector<4x3xf32> -> vector<4x3xf32>
    %c0_21 = arith.constant 0 : index
    %c0_22 = arith.constant 0 : index
    %31 = vector.load %arg9[%c0_21, %c0_22] : memref<1x3xf32, #tpu.memory_space<vmem>>, vector<1x3xf32>
    %32 = vector.broadcast %31 : vector<1x3xf32> to vector<4x3xf32>
    %33 = arith.addf %30, %32 : vector<4x3xf32>
    %c0_23 = arith.constant 0 : index
    %c0_24 = arith.constant 0 : index
    %34 = vector.load %arg10[%c0_23, %c0_24] : memref<4x3xf32, #tpu.memory_space<vmem>>, vector<4x3xf32>
    tpu.vector_store %arg10[%c0_23, %c0_24], %33 {strides = array<i32>} : memref<4x3xf32, #tpu.memory_space<vmem>>, vector<4x3xf32>,
    return
  }
  func.func @transform_0(%arg0: i32) -> (i32, i32, i32, i32) {
    %c0_i32 = arith.constant 0 : i32
    %c0_i32_0 = arith.constant 0 : i32
    %c0_i32_1 = arith.constant 0 : i32
    %c0_i32_2 = arith.constant 0 : i32
    return %c0_i32, %arg0, %c0_i32_0, %c0_i32_1 : i32, i32, i32, i32
  }
  func.func @transform_1(%arg0: i32) -> (i32, i32) {
    %c0_i32 = arith.constant 0 : i32
    %c0_i32_0 = arith.constant 0 : i32
    %c0_i32_1 = arith.constant 0 : i32
    return %c0_i32, %c0_i32_0 : i32, i32
  }
  func.func @transform_2(%arg0: i32) -> (i32, i32) {
    %c0_i32 = arith.constant 0 : i32
    %c0_i32_0 = arith.constant 0 : i32
    %c0_i32_1 = arith.constant 0 : i32
    return %c0_i32, %c0_i32_0 : i32, i32
  }
  func.func @transform_3(%arg0: i32) -> (i32, i32) {
    %c0_i32 = arith.constant 0 : i32
    %c0_i32_0 = arith.constant 0 : i32
    %c0_i32_1 = arith.constant 0 : i32
    return %c0_i32, %c0_i32_0 : i32, i32
  }
  func.func @transform_4(%arg0: i32) -> (i32, i32) {
    %c0_i32 = arith.constant 0 : i32
    %c0_i32_0 = arith.constant 0 : i32
    %c0_i32_1 = arith.constant 0 : i32
    return %c0_i32, %c0_i32_0 : i32, i32
  }
  func.func @transform_5(%arg0: i32) -> (i32, i32) {
    %c0_i32 = arith.constant 0 : i32
    %c0_i32_0 = arith.constant 0 : i32
    %c0_i32_1 = arith.constant 0 : i32
    return %c0_i32, %c0_i32_0 : i32, i32
  }
  func.func @transform_6(%arg0: i32) -> (i32, i32) {
    %c0_i32 = arith.constant 0 : i32
    %c0_i32_0 = arith.constant 0 : i32
    %c0_i32_1 = arith.constant 0 : i32
    return %c0_i32, %c0_i32_0 : i32, i32
  }
  func.func @transform_7(%arg0: i32) -> (i32, i32) {
    %c0_i32 = arith.constant 0 : i32
    %c0_i32_0 = arith.constant 0 : i32
    %c0_i32_1 = arith.constant 0 : i32
    return %c0_i32, %c0_i32_0 : i32, i32
  }
  func.func @transform_8(%arg0: i32) -> (i32, i32) {
    %c0_i32 = arith.constant 0 : i32
    %c0_i32_0 = arith.constant 0 : i32
    %c0_i32_1 = arith.constant 0 : i32
    return %c0_i32, %c0_i32_0 : i32, i32
  }
  func.func @transform_9(%arg0: i32) -> (i32, i32) {
    %c0_i32 = arith.constant 0 : i32
    %c0_i32_0 = arith.constant 0 : i32
    return %arg0, %c0_i32 : i32, i32
  }
}

</mosaic_0001>

<llo_original>
// kernel: tpu_custom_call.1
$region0: #{tpu_custom_call.1}
  #allocation0 [shape = 'u32[]', space=smem, size = 0x4, offset = 0x4, fixed_abs, tag = 'smem constant byte address 0x4 - core index']
  #allocation1 [shape = 'u32[72,128]{1,0:T(1,128)}', space=vmem, size = 0x9000, scoped, tag = 'internal scratch']
  %s0 = inlined_call_operand.vmem [shape: f32[2,4,8,32], index: 0, kind: input, shape index: {}]
  %s1 = inlined_call_operand.vmem [shape: f32[32,32], index: 1, kind: input, shape index: {}]
  %s2 = inlined_call_operand.vmem [shape: f32[1,32], index: 2, kind: input, shape index: {}]
  %s3 = inlined_call_operand.vmem [shape: f32[128,64], index: 3, kind: input, shape index: {}]
  %s4 = inlined_call_operand.vmem [shape: f32[1,64], index: 4, kind: input, shape index: {}]
  %s5 = inlined_call_operand.vmem [shape: f32[64,64], index: 5, kind: input, shape index: {}]
  %s6 = inlined_call_operand.vmem [shape: f32[1,64], index: 6, kind: input, shape index: {}]
  %s7 = inlined_call_operand.vmem [shape: f32[64,3], index: 7, kind: input, shape index: {}]
  %s8 = inlined_call_operand.vmem [shape: f32[1,3], index: 8, kind: input, shape index: {}]
  %s9 = inlined_call_operand.hbm [shape: f32[4,3], index: 9, kind: output, shape index: {}]
  %s10 = sld [smem:[#allocation0]]
  $region46: #{tpu_custom_call.1} parent=0
    _
  %s12 = ssub.s32 1, %s10
  %s13 = scalar_select 0, %s12, %s10
  $region1: #{tpu_custom_call.1} parent=0
    #allocation2 [shape = 'u8[2048]{0}', space=vmem, size = 0x800, scoped, tag = 'output window, operand 0, single buffered']
    #allocation3 [shape = 's32[1]{0}', space=sflag, size = 0x4, scoped, tag = 'scoped memory for tpu_custom_call.1']
    %14 = vsyncpa [#allocation3], 0
    // Predicated region
    $region2: #{tpu_custom_call.1} parent=1 // pred_check
      _
    $region3: #{tpu_custom_call.1} parent=1 // pred_check_branch
      %16 = sbr.rel (0) target = $region5
    $region4: #{tpu_custom_call.1} parent=1 // pred_region
      _
    $region5: #{tpu_custom_call.1} parent=1 // pred_fallthru
      _
    // Predicated region
    $region6: #{tpu_custom_call.1} parent=1 // pred_check
      _
    $region7: #{tpu_custom_call.1} parent=1 // pred_check_branch
      %18 = sbr.rel (0) target = $region9
    $region8: #{tpu_custom_call.1} parent=1 // pred_region
      _
    $region9: #{tpu_custom_call.1} parent=1 // pred_fallthru
      _
    // Predicated region
    $region10: #{tpu_custom_call.1} parent=1 // pred_check
      _
    $region11: #{tpu_custom_call.1} parent=1 // pred_check_branch
      %20 = sbr.rel (0) target = $region13
    $region12: #{tpu_custom_call.1} parent=1 // pred_region
      _
    $region13: #{tpu_custom_call.1} parent=1 // pred_fallthru
      _
    // Predicated region
    $region14: #{tpu_custom_call.1} parent=1 // pred_check
      _
    $region15: #{tpu_custom_call.1} parent=1 // pred_check_branch
      %22 = sbr.rel (0) target = $region17
    $region16: #{tpu_custom_call.1} parent=1 // pred_region
      _
    $region17: #{tpu_custom_call.1} parent=1 // pred_fallthru
      _
    // Predicated region
    $region18: #{tpu_custom_call.1} parent=1 // pred_check
      _
    $region19: #{tpu_custom_call.1} parent=1 // pred_check_branch
      %24 = sbr.rel (0) target = $region21
    $region20: #{tpu_custom_call.1} parent=1 // pred_region
      _
    $region21: #{tpu_custom_call.1} parent=1 // pred_fallthru
      _
    // Predicated region
    $region22: #{tpu_custom_call.1} parent=1 // pred_check
      _
    $region23: #{tpu_custom_call.1} parent=1 // pred_check_branch
      %26 = sbr.rel (0) target = $region25
    $region24: #{tpu_custom_call.1} parent=1 // pred_region
      _
    $region25: #{tpu_custom_call.1} parent=1 // pred_fallthru
      _
    // Predicated region
    $region26: #{tpu_custom_call.1} parent=1 // pred_check
      _
    $region27: #{tpu_custom_call.1} parent=1 // pred_check_branch
      %28 = sbr.rel (0) target = $region29
    $region28: #{tpu_custom_call.1} parent=1 // pred_region
      _
    $region29: #{tpu_custom_call.1} parent=1 // pred_fallthru
      _
    // Predicated region
    $region30: #{tpu_custom_call.1} parent=1 // pred_check
      _
    $region31: #{tpu_custom_call.1} parent=1 // pred_check_branch
      %30 = sbr.rel (0) target = $region33
    $region32: #{tpu_custom_call.1} parent=1 // pred_region
      _
    $region33: #{tpu_custom_call.1} parent=1 // pred_fallthru
      _
    // Predicated region
    $region34: #{tpu_custom_call.1} parent=1 // pred_check
      _
    $region35: #{tpu_custom_call.1} parent=1 // pred_check_branch
      %32 = sbr.rel (0) target = $region37
    $region36: #{tpu_custom_call.1} parent=1 // pred_region
      _
    $region37: #{tpu_custom_call.1} parent=1 // pred_fallthru
      _
    %v33 = vld [vmem:[%s0] sm:$0xff]
    %v34 = vld [vmem:[%s0 + $0x8] sm:$0xff]
    %v35 = vld [vmem:[%s0 + $0x10] sm:$0xff]
    %v36 = vld [vmem:[%s0 + $0x18] sm:$0xff]
    %v37 = vld [vmem:[%s0 + $0x20] sm:$0xff]
    %v38 = vld [vmem:[%s0 + $0x28] sm:$0xff]
    %v39 = vld [vmem:[%s0 + $0x30] sm:$0xff]
    %v40 = vld [vmem:[%s0 + $0x38] sm:$0xff]
    %v41 = vld [vmem:[%s1] sm:$0xff]
    %v42 = vld [vmem:[%s1 + $0x8] sm:$0xff]
    %v43 = vld [vmem:[%s1 + $0x10] sm:$0xff]
    %v44 = vld [vmem:[%s1 + $0x18] sm:$0xff]
    %vm45 = vcmask 261120
    %v47 = vsel %vm45, %v33, 0
    %v50 = vsel %vm45, %v34, 0
    %v53 = vsel %vm45, %v35, 0
    %v56 = vsel %vm45, %v36, 0
    %v59 = vsel %vm45, %v37, 0
    %v62 = vsel %vm45, %v38, 0
    %v65 = vsel %vm45, %v39, 0
    %v68 = vsel %vm45, %v40, 0
    %70 = vmatpush.msra.mxu0 0.0
    %71 = vmatpush.msra.mxu0 0.0
    %72 = vmatpush.msra.mxu0 0.0
    %73 = vmatpush.msra.mxu0 0.0
    %74 = vmatpush.msra.mxu0 0.0
    %75 = vmatpush.msra.mxu0 0.0
    %76 = vmatpush.msra.mxu0 0.0
    %77 = vmatpush.msra.mxu0 0.0
    %78 = vmatpush.msra.mxu0 0.0
    %79 = vmatpush.msra.mxu0 0.0
    %80 = vmatpush.msra.mxu0 0.0
    %81 = vmatpush.msra.mxu0 0.0
    %82 = vmatpush.msra.mxu0 %v44
    %83 = vmatpush.msra.mxu0 %v43
    %84 = vmatpush.msra.mxu0 %v42
    %85 = vmatpush.msra.mxu0 %v41
    %86 = vmatmul.f32.gmra.mxu0 %v47
    %v87 = vpop.f32.mrf.mxu0
    %v88 = vadd.f32 0.0, %v87
    %89 = vmatmul.f32.gmra.mxu0 %v50
    %v90 = vpop.f32.mrf.mxu0
    %v91 = vadd.f32 0.0, %v90
    %92 = vmatmul.f32.gmra.mxu0 %v53
    %v93 = vpop.f32.mrf.mxu0
    %v94 = vadd.f32 0.0, %v93
    %95 = vmatmul.f32.gmra.mxu0 %v56
    %v96 = vpop.f32.mrf.mxu0
    %v97 = vadd.f32 0.0, %v96
    %98 = vmatmul.f32.gmra.mxu0 %v59
    %v99 = vpop.f32.mrf.mxu0
    %v100 = vadd.f32 0.0, %v99
    %101 = vmatmul.f32.gmra.mxu0 %v62
    %v102 = vpop.f32.mrf.mxu0
    %v103 = vadd.f32 0.0, %v102
    %104 = vmatmul.f32.gmra.mxu0 %v65
    %v105 = vpop.f32.mrf.mxu0
    %v106 = vadd.f32 0.0, %v105
    %107 = vmatmul.f32.gmra.mxu0 %v68
    %v108 = vpop.f32.mrf.mxu0
    %v109 = vadd.f32 0.0, %v108
    %110 = vdwg.mxu0
    %v111 = vsel %vm45, %v88, -inf
    %v112 = vrot.slane %v111, 4
    %v113 = vmax.f32 %v111, %v112
    %v114 = vrot.slane %v113, 2
    %v115 = vmax.f32 %v113, %v114
    %v116 = vrot.slane %v115, 1
    %v117 = vmax.f32 %v115, %v116
    %v118 = vsel %vm45, %v91, -inf
    %v119 = vrot.slane %v118, 4
    %v120 = vmax.f32 %v118, %v119
    %v121 = vrot.slane %v120, 2
    %v122 = vmax.f32 %v120, %v121
    %v123 = vrot.slane %v122, 1
    %v124 = vmax.f32 %v122, %v123
    %v125 = vsel %vm45, %v94, -inf
    %v126 = vrot.slane %v125, 4
    %v127 = vmax.f32 %v125, %v126
    %v128 = vrot.slane %v127, 2
    %v129 = vmax.f32 %v127, %v128
    %v130 = vrot.slane %v129, 1
    %v131 = vmax.f32 %v129, %v130
    %v132 = vsel %vm45, %v97, -inf
    %v133 = vrot.slane %v132, 4
    %v134 = vmax.f32 %v132, %v133
    %v135 = vrot.slane %v134, 2
    %v136 = vmax.f32 %v134, %v135
    %v137 = vrot.slane %v136, 1
    %v138 = vmax.f32 %v136, %v137
    %v139 = vsel %vm45, %v100, -inf
    %v140 = vrot.slane %v139, 4
    %v141 = vmax.f32 %v139, %v140
    %v142 = vrot.slane %v141, 2
    %v143 = vmax.f32 %v141, %v142
    %v144 = vrot.slane %v143, 1
    %v145 = vmax.f32 %v143, %v144
    %v146 = vsel %vm45, %v103, -inf
    %v147 = vrot.slane %v146, 4
    %v148 = vmax.f32 %v146, %v147
    %v149 = vrot.slane %v148, 2
    %v150 = vmax.f32 %v148, %v149
    %v151 = vrot.slane %v150, 1
    %v152 = vmax.f32 %v150, %v151
    %v153 = vsel %vm45, %v106, -inf
    %v154 = vrot.slane %v153, 4
    %v155 = vmax.f32 %v153, %v154
    %v156 = vrot.slane %v155, 2
    %v157 = vmax.f32 %v155, %v156
    %v158 = vrot.slane %v157, 1
    %v159 = vmax.f32 %v157, %v158
    %v160 = vsel %vm45, %v109, -inf
    %v161 = vrot.slane %v160, 4
    %v162 = vmax.f32 %v160, %v161
    %v163 = vrot.slane %v162, 2
    %v164 = vmax.f32 %v162, %v163
    %v165 = vrot.slane %v164, 1
    %v166 = vmax.f32 %v164, %v165
    %v167 = vld [vmem:[%s2] sm:$0x1]
    %v169 = vperm.slane %v167, 0
    %v171 = vadd.f32 %v117, %v169
    %v172 = vadd.f32 %v124, %v169
    %v173 = vadd.f32 %v131, %v169
    %v174 = vadd.f32 %v138, %v169
    %v175 = vadd.f32 %v145, %v169
    %v176 = vadd.f32 %v152, %v169
    %v177 = vadd.f32 %v159, %v169
    %v178 = vadd.f32 %v166, %v169
    %v179 = vsub.f32 %v171, %v175
    %v180 = vsub.f32 %v172, %v176
    %v181 = vsub.f32 %v173, %v177
    %v182 = vsub.f32 %v174, %v178
    %v183 = vand.u32 2147483647, %v179
    %v184 = vand.u32 2147483647, %v180
    %v185 = vand.u32 2147483647, %v181
    %v186 = vand.u32 2147483647, %v182
    %v187 = vmul.f32 %v171, %v175
    %v188 = vmul.f32 %v172, %v176
    %v189 = vmul.f32 %v173, %v177
    %v190 = vmul.f32 %v174, %v178
    %v195 = vrot.slane %v172, 7
    %vm196 = vcmask 1041409
    %v197 = vsel %vm196, %v195, %v171
    %v198 = vrot.slane %v173, 6
    %vm199 = vcmask 1042434
    %v200 = vsel %vm199, %v198, %v197
    %v201 = vrot.slane %v174, 5
    %vm202 = vcmask 1043459
    %v203 = vsel %vm202, %v201, %v200
    %v209 = vrot.slane %v176, 7
    %v210 = vsel %vm196, %v209, %v175
    %v211 = vrot.slane %v177, 6
    %v212 = vsel %vm199, %v211, %v210
    %v213 = vrot.slane %v178, 5
    %v214 = vsel %vm202, %v213, %v212
    %215 = vrot.lane.b32.xlu0 %v214, 32
    %v216 = vpop.permute.xlu0 %215
    %v222 = vrot.slane %v184, 7
    %v223 = vsel %vm196, %v222, %v183
    %v224 = vrot.slane %v185, 6
    %v225 = vsel %vm199, %v224, %v223
    %v226 = vrot.slane %v186, 5
    %v227 = vsel %vm202, %v226, %v225
    %228 = vrot.lane.b32.xlu0 %v227, 64
    %v229 = vpop.permute.xlu0 %228
    %v235 = vrot.slane %v188, 7
    %v236 = vsel %vm196, %v235, %v187
    %v237 = vrot.slane %v189, 6
    %v238 = vsel %vm199, %v237, %v236
    %v239 = vrot.slane %v190, 5
    %v240 = vsel %vm202, %v239, %v238
    %241 = vrot.lane.b32.xlu0 %v240, 96
    %v242 = vpop.permute.xlu0 %241
    %v244 = vsel %vm45, %v203, %v216
    %vm245 = vcmask 523264
    %v246 = vsel %vm245, %v244, %v229
    %vm247 = vcmask 785408
    %v248 = vsel %vm247, %v246, %v242
    %v249 = vld [vmem:[%s3] sm:$0xff]
    %v250 = vld [vmem:[%s3 + $0x8] sm:$0xff]
    %v251 = vld [vmem:[%s3 + $0x10] sm:$0xff]
    %v252 = vld [vmem:[%s3 + $0x18] sm:$0xff]
    %v253 = vld [vmem:[%s3 + $0x20] sm:$0xff]
    %v254 = vld [vmem:[%s3 + $0x28] sm:$0xff]
    %v255 = vld [vmem:[%s3 + $0x30] sm:$0xff]
    %v256 = vld [vmem:[%s3 + $0x38] sm:$0xff]
    %v257 = vld [vmem:[%s3 + $0x40] sm:$0xff]
    %v258 = vld [vmem:[%s3 + $0x48] sm:$0xff]
    %v259 = vld [vmem:[%s3 + $0x50] sm:$0xff]
    %v260 = vld [vmem:[%s3 + $0x58] sm:$0xff]
    %v261 = vld [vmem:[%s3 + $0x60] sm:$0xff]
    %v262 = vld [vmem:[%s3 + $0x68] sm:$0xff]
    %v263 = vld [vmem:[%s3 + $0x70] sm:$0xff]
    %v264 = vld [vmem:[%s3 + $0x78] sm:$0xff]
    %v265 = vld [vmem:[%s4] sm:$0x1]
    %v267 = vperm.slane %v265, 0
    %269 = vmatpush.msra.mxu0 %v264
    %270 = vmatpush.msra.mxu0 %v263
    %271 = vmatpush.msra.mxu0 %v262
    %272 = vmatpush.msra.mxu0 %v261
    %273 = vmatpush.msra.mxu0 %v260
    %274 = vmatpush.msra.mxu0 %v259
    %275 = vmatpush.msra.mxu0 %v258
    %276 = vmatpush.msra.mxu0 %v257
    %277 = vmatpush.msra.mxu0 %v256
    %278 = vmatpush.msra.mxu0 %v255
    %279 = vmatpush.msra.mxu0 %v254
    %280 = vmatpush.msra.mxu0 %v253
    %281 = vmatpush.msra.mxu0 %v252
    %282 = vmatpush.msra.mxu0 %v251
    %283 = vmatpush.msra.mxu0 %v250
    %284 = vmatpush.msra.mxu0 %v249
    %285 = vmatmul.f32.gmra.mxu0 %v248
    %v286 = vpop.f32.mrf.mxu0
    %v287 = vadd.f32 %v267, %v286
    %288 = vdwg.mxu0
    %v289 = vtanh.pop %v287
    %v290 = vld [vmem:[%s5] sm:$0xff]
    %v291 = vld [vmem:[%s5 + $0x8] sm:$0xff]
    %v292 = vld [vmem:[%s5 + $0x10] sm:$0xff]
    %v293 = vld [vmem:[%s5 + $0x18] sm:$0xff]
    %v294 = vld [vmem:[%s5 + $0x20] sm:$0xff]
    %v295 = vld [vmem:[%s5 + $0x28] sm:$0xff]
    %v296 = vld [vmem:[%s5 + $0x30] sm:$0xff]
    %v297 = vld [vmem:[%s5 + $0x38] sm:$0xff]
    %v298 = vld [vmem:[%s6] sm:$0x1]
    %v300 = vperm.slane %v298, 0
    %v303 = vsel %vm245, %v289, 0
    %305 = vmatpush.msra.mxu0 0.0
    %306 = vmatpush.msra.mxu0 0.0
    %307 = vmatpush.msra.mxu0 0.0
    %308 = vmatpush.msra.mxu0 0.0
    %309 = vmatpush.msra.mxu0 0.0
    %310 = vmatpush.msra.mxu0 0.0
    %311 = vmatpush.msra.mxu0 0.0
    %312 = vmatpush.msra.mxu0 0.0
    %313 = vmatpush.msra.mxu0 %v297
    %314 = vmatpush.msra.mxu0 %v296
    %315 = vmatpush.msra.mxu0 %v295
    %316 = vmatpush.msra.mxu0 %v294
    %317 = vmatpush.msra.mxu0 %v293
    %318 = vmatpush.msra.mxu0 %v292
    %319 = vmatpush.msra.mxu0 %v291
    %320 = vmatpush.msra.mxu0 %v290
    %321 = vmatmul.f32.gmra.mxu0 %v303
    %v322 = vpop.f32.mrf.mxu0
    %v323 = vadd.f32 %v300, %v322
    %324 = vdwg.mxu0
    %v325 = vtanh.pop %v323
    %v326 = vld [vmem:[%s7] sm:$0xff]
    %v327 = vld [vmem:[%s7 + $0x8] sm:$0xff]
    %v328 = vld [vmem:[%s7 + $0x10] sm:$0xff]
    %v329 = vld [vmem:[%s7 + $0x18] sm:$0xff]
    %v330 = vld [vmem:[%s7 + $0x20] sm:$0xff]
    %v331 = vld [vmem:[%s7 + $0x28] sm:$0xff]
    %v332 = vld [vmem:[%s7 + $0x30] sm:$0xff]
    %v333 = vld [vmem:[%s7 + $0x38] sm:$0xff]
    %v334 = vld [vmem:[%s8] sm:$0x1]
    %v336 = vperm.slane %v334, 0
    %v339 = vsel %vm245, %v325, 0
    %341 = vmatpush.msra.mxu0 0.0
    %342 = vmatpush.msra.mxu0 0.0
    %343 = vmatpush.msra.mxu0 0.0
    %344 = vmatpush.msra.mxu0 0.0
    %345 = vmatpush.msra.mxu0 0.0
    %346 = vmatpush.msra.mxu0 0.0
    %347 = vmatpush.msra.mxu0 0.0
    %348 = vmatpush.msra.mxu0 0.0
    %349 = vmatpush.msra.mxu0 %v333
    %350 = vmatpush.msra.mxu0 %v332
    %351 = vmatpush.msra.mxu0 %v331
    %352 = vmatpush.msra.mxu0 %v330
    %353 = vmatpush.msra.mxu0 %v329
    %354 = vmatpush.msra.mxu0 %v328
    %355 = vmatpush.msra.mxu0 %v327
    %356 = vmatpush.msra.mxu0 %v326
    %357 = vmatmul.f32.gmra.mxu0 %v339
    %v358 = vpop.f32.mrf.mxu0
    %v359 = vadd.f32 %v336, %v358
    %360 = vdwg.mxu0
    %vm361 = vcmask 19456
    %362 = vst.msk [vmem:[#allocation2] sm:$0xf] %vm361, %v359
    // Predicated region
    $region38: #{tpu_custom_call.1} parent=1 // pred_check
      _
    $region39: #{tpu_custom_call.1} parent=1 // pred_check_branch
      %364 = sbr.rel (0) target = $region41
    $region40: #{tpu_custom_call.1} parent=1 // pred_region
      %366 = vsyncadd [#allocation3], 0
      %s368 = sshll.u32 [#allocation2], 4
      %s369 = int_to_ptr.vmem [resolvable:$true] %s368
      %s370 = sshll.u32 %s9, 4
      %s371 = int_to_ptr.hbm [resolvable:$true] %s370
      %373 = dma.vmem_to_hbm [thread:$0]  %s369, 64, %s371, [#allocation3]
    $region41: #{tpu_custom_call.1} parent=1 // pred_fallthru
      _
    // Predicated region
    $region42: #{tpu_custom_call.1} parent=1 // pred_check
      _
    $region43: #{tpu_custom_call.1} parent=1 // pred_check_branch
      %375 = sbr.rel (0) target = $region45
    $region44: #{tpu_custom_call.1} parent=1 // pred_region
      %377 = dma.done [#allocation3], 64
    $region45: #{tpu_custom_call.1} parent=1 // pred_fallthru
      _
    %378 = vsyncpa [#allocation3], 1

</llo_original>
